<compile_context>
chip_gen: v7x
topology: tpu7x:2x2x1
jax: 0.10.0
libtpu: 0.0.40
codegen_flags: <defaults>
</compile_context>

<pallas_src>
import functools

import jax
import jax.numpy as jnp
from jax import lax
from jax.experimental import pallas as pl
from jax.experimental.pallas import tpu as pltpu


def _round_up(x, m):
    return (x + m - 1) // m * m


def _resident_spec(block_shape, index_map):
    """Single-buffered BlockSpec for operands whose block index never changes."""
    buffered = getattr(pl, "Buffered", None)
    if buffered is not None:
        try:
            return pl.BlockSpec(block_shape, index_map, pipeline_mode=buffered(1))
        except TypeError:
            pass
    return pl.BlockSpec(block_shape, index_map)


def _conv1d_kernel(x_ref, w_ref, b_ref, o_ref, *, kernel_size, stride, dilation,
                   tile_l, win_l, grid_l):
    """One (batch, L_out-tile) output block: out = sum_k W_k @ x_tap_k + bias.

    x_ref : (stride, C_in, L_x)   stride-decimated, zero-padded input row (one batch)
    w_ref : (K, C_out, C_in)      per-tap weight matrices (VMEM-resident)
    b_ref : (C_out, 1)            bias column (VMEM-resident)
    o_ref : (C_out, tile_l)       channel-first output tile (lane dim = length)
    """
    if grid_l == 1:
        base = 0                                               # fully static path
    else:
        # tile_l is a multiple of 128 whenever grid_l > 1, so the window loads
        # below start on a lane-tile boundary.
        base = pl.multiple_of(pl.program_id(1) * tile_l, 128)

    c_out = o_ref.shape[0]
    acc = jnp.zeros((c_out, tile_l), jnp.float32)
    wins = {}  # one aligned window load per distinct stride-phase
    for k in range(kernel_size):
        p = k * dilation
        phase, off = p % stride, p // stride
        if phase not in wins:
            wins[phase] = x_ref[phase, :, pl.ds(base, win_l)]          # (C_in, win_l)
        x_tap = lax.slice_in_dim(wins[phase], off, off + tile_l, axis=1)  # static slice
        acc = acc + jnp.dot(w_ref[k], x_tap, preferred_element_type=jnp.float32)
    o_ref[...] = (acc + b_ref[...].astype(jnp.float32)).astype(o_ref.dtype)


def conv1d_pallas(x, weight, bias, *, stride, padding, dilation, compute_dtype=None):
    """Forward pass matching the reference PyTorch Conv1d module."""
    B, C_in, L = x.shape
    C_out, C_in_w, K = weight.shape
    assert C_in == C_in_w, f"Expected {C_in_w} channels, got {C_in}"
    if stride < 1 or dilation < 1 or padding < 0:
        raise ValueError("require stride >= 1, dilation >= 1, padding >= 0")

    dilated_k = 1 + dilation * (K - 1)
    L_pad = L + 2 * padding
    if L_pad < dilated_k:
        raise ValueError(
            f"padded length {L_pad} is smaller than dilated kernel {dilated_k}")
    L_out = (L_pad - dilated_k) // stride + 1          # integer arithmetic (no FP floor)

    out_dtype = x.dtype
    cdtype = jnp.dtype(compute_dtype) if compute_dtype is not None else jnp.dtype(x.dtype)

    # ---- output-length tiling (lane dim of the output) ----------------------
    if L_out <= 128:
        tile_l = L_out                                  # equals full dim; no 128 constraint
    else:
        cap = 2048
        while cap > 128 and C_out * cap * 4 > (4 << 20):    # bound the f32 accumulator
            cap //= 2
        tile_l = min(_round_up(L_out, 128), cap)        # multiple of 128
    num_l = pl.cdiv(L_out, tile_l)

    # ---- stride-decimated view of x (single cheap pass; no K-fold inflation) --
    #   x_dec[b, r, c, q] = x_padded[b, c, q*stride + r]
    x_p = jnp.pad(x, ((0, 0), (0, 0), (padding, padding)))
    L_dec = -(-L_pad // stride)                         # ceil(L_pad / stride)
    x_p = jnp.pad(x_p, ((0, 0), (0, 0), (0, L_dec * stride - L_pad)))
    x_dec = x_p.reshape(B, C_in, L_dec, stride).transpose(0, 3, 1, 2)  # (B, stride, C_in, L_dec)

    max_off = ((K - 1) * dilation) // stride
    win_l = tile_l + max_off
    L_x = _round_up(max(L_dec, num_l * tile_l + max_off), 128)
    x_dec = jnp.pad(x_dec, ((0, 0), (0, 0), (0, 0), (0, L_x - L_dec)))
    if x_dec.dtype != cdtype:
        x_dec = x_dec.astype(cdtype)

    # Per-tap weight matrices and a broadcastable bias column (f32 accumulation).
    w_taps = jnp.transpose(weight, (2, 0, 1)).astype(cdtype)           # (K, C_out, C_in)
    b_col = bias.reshape(C_out, 1).astype(jnp.float32)

    # ---- VMEM budget: actual working set + headroom ---------------------------
    isz = cdtype.itemsize
    x_block = stride * C_in * L_x * isz                 # per-batch resident input row
    out_block = C_out * tile_l * jnp.dtype(out_dtype).itemsize
    resident = int(w_taps.size) * isz + int(b_col.size) * 4
    acc_bytes = C_out * tile_l * 4
    need = 2 * x_block + 2 * out_block + resident + acc_bytes
    try:
        vmem_physical = pltpu.get_tpu_info().vmem_capacity_bytes
    except Exception:
        vmem_physical = 64 << 20                        # conservative (v7x per-core VMEM)
    vmem_limit = int(min(max(int(1.5 * need) + (2 << 20), 8 << 20),
                         int(0.75 * vmem_physical)))
    # TODO(synk): for very large C_in * L (per-batch decimated row >> VMEM), add a
    # trailing "arbitrary" reduction axis tiling the decimated length / C_in with a
    # VMEM f32 accumulator instead of keeping the whole row resident.

    kernel = functools.partial(
        _conv1d_kernel, kernel_size=K, stride=stride, dilation=dilation,
        tile_l=tile_l, win_l=win_l, grid_l=num_l)

    out = pl.pallas_call(
        kernel,
        out_shape=jax.ShapeDtypeStruct((B, C_out, L_out), out_dtype),
        grid=(B, num_l),
        in_specs=[
            # One decimated input row per batch; its block index is constant across
            # the L-tile axis, so it is DMA'd once per batch.
            pl.BlockSpec((None, stride, C_in, L_x), lambda b, j: (b, 0, 0, 0)),
            # Resident operands: single-buffered (block index never changes).
            _resident_spec((K, C_out, C_in), lambda b, j: (0, 0, 0)),
            _resident_spec((C_out, 1), lambda b, j: (0, 0)),
        ],
        # Output written directly in channel-first (B, C_out, L_out) layout; the
        # ragged final L tile is handled by masked boundary stores.
        out_specs=pl.BlockSpec((None, C_out, tile_l), lambda b, j: (b, 0, j)),
        compiler_params=pltpu.CompilerParams(
            dimension_semantics=("parallel", "parallel"),
            vmem_limit_bytes=vmem_limit,
        ),
    )(x_dec, w_taps, b_col)
    return out


if __name__ == "__main__":
    # Small shapes consistent with the module's forward.
    B, C_in, L = 2, 4, 16
    C_out, K = 8, 3
    stride, padding, dilation = 2, 1, 2
    dtype = jnp.float32

    key = jax.random.PRNGKey(0)
    kx, kw = jax.random.split(key)
    x = jax.random.normal(kx, (B, C_in, L), dtype=dtype)
    # init_weights: weights ~ randn, bias = zeros (deterministic via PRNGKey)
    weight = jax.random.normal(kw, (C_out, C_in, K), dtype=dtype)
    bias = jnp.zeros((C_out,), dtype=dtype)

    out = conv1d_pallas(x, weight, bias, stride=stride, padding=padding,
                        dilation=dilation)
    out = jax.block_until_ready(out)

    # Reference check against XLA's conv (same semantics as the PyTorch loop).
    ref = lax.conv_general_dilated(
        x, weight,
        window_strides=(stride,),
        padding=[(padding, padding)],
        rhs_dilation=(dilation,),
        dimension_numbers=("NCH", "OIH", "NCH"),
    ) + bias[None, :, None]
    assert out.shape == ref.shape, (out.shape, ref.shape)
    assert jnp.allclose(out, ref, atol=1e-4, rtol=1e-4), "mismatch vs reference conv"

    print("KERNEL_OK")
</pallas_src>

<mosaic_0001>
module attributes {stable_mosaic.version = 11 : i64} {
  func.func @_conv1d_kernel(%arg0: i32, %arg1: i32, %arg2: memref<1x2x4x128xf32, #tpu.memory_space<vmem>>, %arg3: memref<3x8x4xf32, #tpu.memory_space<vmem>>, %arg4: memref<8x1xf32, #tpu.memory_space<vmem>>, %arg5: memref<1x8x7xf32, #tpu.memory_space<vmem>>) attributes {dimension_semantics = [#tpu.dimension_semantics<parallel>, #tpu.dimension_semantics<parallel>], iteration_bounds = array<i64: 2, 1>, scalar_prefetch = 0 : i64, scratch_operands = 0 : i64, tpu.core_type = #tpu.core_type<tc>, window_params = [{transform_indices = @transform_0, window_bounds = array<i64: 1, 2, 4, 128>}, {pipeline_mode = #tpu.pipeline_mode<synchronous>, transform_indices = @transform_1, window_bounds = array<i64: 3, 8, 4>}, {pipeline_mode = #tpu.pipeline_mode<synchronous>, transform_indices = @transform_2, window_bounds = array<i64: 8, 1>}, {transform_indices = @transform_3, window_bounds = array<i64: 1, 8, 7>}]} {
    %cst = arith.constant 0.000000e+00 : f32
    %0 = vector.broadcast %cst : f32 to vector<8x7xf32>
    %c0 = arith.constant 0 : index
    %c0_0 = arith.constant 0 : index
    %c0_1 = arith.constant 0 : index
    %c0_2 = arith.constant 0 : index
    %1 = vector.load %arg2[%c0, %c0_0, %c0_1, %c0_2] : memref<1x2x4x128xf32, #tpu.memory_space<vmem>>, vector<1x1x4x9xf32>
    %2 = vector.shape_cast %1 : vector<1x1x4x9xf32> to vector<4x9xf32>
    %3 = vector.extract_strided_slice %2 {offsets = [0, 0], sizes = [4, 7], strides = [1, 1]} : vector<4x9xf32> to vector<4x7xf32>
    %c0_3 = arith.constant 0 : index
    %c0_4 = arith.constant 0 : index
    %c0_5 = arith.constant 0 : index
    %4 = vector.load %arg3[%c0_3, %c0_4, %c0_5] : memref<3x8x4xf32, #tpu.memory_space<vmem>>, vector<1x8x4xf32>
    %5 = vector.shape_cast %4 : vector<1x8x4xf32> to vector<8x4xf32>
    %cst_6 = arith.constant dense<0.000000e+00> : vector<8x7xf32>
    %6 = tpu.matmul %5, %3, %cst_6 {dimension_numbers = #tpu.dot_dimension_numbers<[1], [0], [0], [1], [0, 0, 1, 1], [], []>} : vector<8x4xf32>, vector<4x7xf32>, vector<8x7xf32> -> vector<8x7xf32>
    %7 = arith.addf %0, %6 : vector<8x7xf32>
    %8 = vector.extract_strided_slice %2 {offsets = [0, 1], sizes = [4, 7], strides = [1, 1]} : vector<4x9xf32> to vector<4x7xf32>
    %c1 = arith.constant 1 : index
    %c0_7 = arith.constant 0 : index
    %c0_8 = arith.constant 0 : index
    %9 = vector.load %arg3[%c1, %c0_7, %c0_8] : memref<3x8x4xf32, #tpu.memory_space<vmem>>, vector<1x8x4xf32>
    %10 = vector.shape_cast %9 : vector<1x8x4xf32> to vector<8x4xf32>
    %cst_9 = arith.constant dense<0.000000e+00> : vector<8x7xf32>
    %11 = tpu.matmul %10, %8, %cst_9 {dimension_numbers = #tpu.dot_dimension_numbers<[1], [0], [0], [1], [0, 0, 1, 1], [], []>} : vector<8x4xf32>, vector<4x7xf32>, vector<8x7xf32> -> vector<8x7xf32>
    %12 = arith.addf %7, %11 : vector<8x7xf32>
    %13 = vector.extract_strided_slice %2 {offsets = [0, 2], sizes = [4, 7], strides = [1, 1]} : vector<4x9xf32> to vector<4x7xf32>
    %c2 = arith.constant 2 : index
    %c0_10 = arith.constant 0 : index
    %c0_11 = arith.constant 0 : index
    %14 = vector.load %arg3[%c2, %c0_10, %c0_11] : memref<3x8x4xf32, #tpu.memory_space<vmem>>, vector<1x8x4xf32>
    %15 = vector.shape_cast %14 : vector<1x8x4xf32> to vector<8x4xf32>
    %cst_12 = arith.constant dense<0.000000e+00> : vector<8x7xf32>
    %16 = tpu.matmul %15, %13, %cst_12 {dimension_numbers = #tpu.dot_dimension_numbers<[1], [0], [0], [1], [0, 0, 1, 1], [], []>} : vector<8x4xf32>, vector<4x7xf32>, vector<8x7xf32> -> vector<8x7xf32>
    %17 = arith.addf %12, %16 : vector<8x7xf32>
    %c0_13 = arith.constant 0 : index
    %c0_14 = arith.constant 0 : index
    %18 = vector.load %arg4[%c0_13, %c0_14] : memref<8x1xf32, #tpu.memory_space<vmem>>, vector<8x1xf32>
    %19 = vector.broadcast %18 : vector<8x1xf32> to vector<8x7xf32>
    %20 = arith.addf %17, %19 : vector<8x7xf32>
    %c0_15 = arith.constant 0 : index
    %c0_16 = arith.constant 0 : index
    %c0_17 = arith.constant 0 : index
    %21 = vector.load %arg5[%c0_15, %c0_16, %c0_17] : memref<1x8x7xf32, #tpu.memory_space<vmem>>, vector<1x8x7xf32>
    %22 = vector.shape_cast %21 : vector<1x8x7xf32> to vector<8x7xf32>
    %23 = vector.shape_cast %20 : vector<8x7xf32> to vector<1x8x7xf32>
    tpu.vector_store %arg5[%c0_15, %c0_16, %c0_17], %23 {strides = array<i32>} : memref<1x8x7xf32, #tpu.memory_space<vmem>>, vector<1x8x7xf32>,
    return
  }
  func.func @transform_0(%arg0: i32, %arg1: i32) -> (i32, i32, i32, i32) {
    %c0_i32 = arith.constant 0 : i32
    %c0_i32_0 = arith.constant 0 : i32
    %c0_i32_1 = arith.constant 0 : i32
    %c0_i32_2 = arith.constant 0 : i32
    return %arg0, %c0_i32, %c0_i32_0, %c0_i32_1 : i32, i32, i32, i32
  }
  func.func @transform_1(%arg0: i32, %arg1: i32) -> (i32, i32, i32) {
    %c0_i32 = arith.constant 0 : i32
    %c0_i32_0 = arith.constant 0 : i32
    %c0_i32_1 = arith.constant 0 : i32
    %c0_i32_2 = arith.constant 0 : i32
    return %c0_i32, %c0_i32_0, %c0_i32_1 : i32, i32, i32
  }
  func.func @transform_2(%arg0: i32, %arg1: i32) -> (i32, i32) {
    %c0_i32 = arith.constant 0 : i32
    %c0_i32_0 = arith.constant 0 : i32
    %c0_i32_1 = arith.constant 0 : i32
    return %c0_i32, %c0_i32_0 : i32, i32
  }
  func.func @transform_3(%arg0: i32, %arg1: i32) -> (i32, i32, i32) {
    %c0_i32 = arith.constant 0 : i32
    %c0_i32_0 = arith.constant 0 : i32
    return %arg0, %c0_i32, %arg1 : i32, i32, i32
  }
}

</mosaic_0001>

<llo_original>
// kernel: tpu_custom_call.1
$region0: #{tpu_custom_call.1}
  #allocation0 [shape = 'u32[]', space=smem, size = 0x4, offset = 0x4, fixed_abs, tag = 'smem constant byte address 0x4 - core index']
  #allocation1 [shape = 'u32[144,128]{1,0:T(1,128)}', space=vmem, size = 0x12000, scoped, tag = 'internal scratch']
  %s0 = inlined_call_operand.vmem [shape: f32[2,2,4,128], index: 0, kind: input, shape index: {}]
  %s1 = inlined_call_operand.vmem [shape: f32[3,8,4], index: 1, kind: input, shape index: {}]
  %s2 = inlined_call_operand.vmem [shape: f32[8,1], index: 2, kind: input, shape index: {}]
  %s3 = inlined_call_operand.vmem [shape: f32[2,8,7], index: 3, kind: output, shape index: {}]
  %s4 = sld [smem:[#allocation0]]
  $region45: #{tpu_custom_call.1} parent=0
    _
  %s6 = ssub.s32 1, %s4
  %s7 = scalar_select 0, %s6, %s4
  loop: start=0, step=1, limit=4
  $region2: #{tpu_custom_call.1} parent=0 // loop_pre_header
    _
  $region3: #{tpu_custom_call.1} parent=0 // loop_header
    %s9 = sphi 0, %s13
    %p10 = scmp.ge.s32.totalorder %s9, 4
    %s16 = sphi 0, %s28
    %s17 = sphi 0, %s24
    %s18 = sphi 0, %s16
    %s19 = sphi 0, %s17
    %s20 = sphi 0, %s18
    %s21 = sphi 0, %s19
    %s31 = sphi 0, %s33
    %s34 = sphi 0, %s31
    %s35 = sphi 0, %s34
    %s51 = sphi 0, %s35
    %s55 = sphi 0, %s55
    %s57 = sphi 0, %s55
    %s58 = sphi 0, %s57
    %s72 = sphi 0, %s58
    %s76 = sphi 0, %s76
    %s78 = sphi 0, %s76
    %s79 = sphi 0, %s78
    %s93 = sphi 0, %s79
    %s101 = sphi 0, %s103
    %s104 = sphi 0, %s101
    %s105 = sphi 0, %s104
    %s121 = sphi 0, %s105
  $region4: #{tpu_custom_call.1} parent=0 // loop_header_branch
    %12 = sbr.rel (%p10) target = $region8
  $region5: #{tpu_custom_call.1} parent=0 // loop_body
    %s14 = ssub.s32 %s9, 1
    %s15 = ssub.s32 %s9, 2
    %s22 = sadd.s32 1, %s17
    %p23 = scmp.ge.s32.totalorder %s22, 1
    %s24 = scalar_select %p23, 0, %s22
    %s25 = sadd.s32 1, %s16
    %s26 = scalar_select %p23, %s25, %s16
    %p27 = scmp.ge.s32.totalorder %s26, 2
    %s28 = scalar_select %p27, 0, %s26
    %s29 = ssub.s32 %s16, %s28
    %p30 = scmp.eq.s32.totalorder %s29, 0
    %s32 = sadd.s32 %s31, 1
    %s33 = scalar_select %p30, %s31, %s32
    %p36 = pneg %p30
    %p37 = scmp.eq.s32.totalorder %s9, 1
    %p38 = por %p36, %p37
    %p39 = scmp.ne.s32.totalorder %s31, %s34
    %p40 = scmp.eq.s32.totalorder %s9, 0
    %p41 = por %p39, %p40
    %p42 = scmp.ne.s32.totalorder %s31, %s34
    %p43 = scmp.eq.s32.totalorder %s14, 1
    %p44 = por %p42, %p43
    %p45 = scmp.ne.s32.totalorder %s34, %s35
    %p46 = scmp.eq.s32.totalorder %s14, 0
    %p47 = por %p45, %p46
    %p48 = scmp.ne.s32.totalorder %s34, %s35
    %p49 = scmp.eq.s32.totalorder %s15, 1
    %p50 = por %p48, %p49
    %p52 = scmp.ne.s32.totalorder %s35, %s51
    %p53 = scmp.eq.s32.totalorder %s15, 0
    %p54 = por %p52, %p53
    %s56 = sadd.s32 %s55, 1
    %p59 = scmp.eq.s32.totalorder %s9, 1
    %p60 = scmp.ne.s32.totalorder %s55, %s57
    %p61 = scmp.eq.s32.totalorder %s9, 0
    %p62 = por %p60, %p61
    %p63 = scmp.ne.s32.totalorder %s55, %s57
    %p64 = scmp.eq.s32.totalorder %s14, 1
    %p65 = por %p63, %p64
    %p66 = scmp.ne.s32.totalorder %s57, %s58
    %p67 = scmp.eq.s32.totalorder %s14, 0
    %p68 = por %p66, %p67
    %p69 = scmp.ne.s32.totalorder %s57, %s58
    %p70 = scmp.eq.s32.totalorder %s15, 1
    %p71 = por %p69, %p70
    %p73 = scmp.ne.s32.totalorder %s58, %s72
    %p74 = scmp.eq.s32.totalorder %s15, 0
    %p75 = por %p73, %p74
    %s77 = sadd.s32 %s76, 1
    %p80 = scmp.eq.s32.totalorder %s9, 1
    %p81 = scmp.ne.s32.totalorder %s76, %s78
    %p82 = scmp.eq.s32.totalorder %s9, 0
    %p83 = por %p81, %p82
    %p84 = scmp.ne.s32.totalorder %s76, %s78
    %p85 = scmp.eq.s32.totalorder %s14, 1
    %p86 = por %p84, %p85
    %p87 = scmp.ne.s32.totalorder %s78, %s79
    %p88 = scmp.eq.s32.totalorder %s14, 0
    %p89 = por %p87, %p88
    %p90 = scmp.ne.s32.totalorder %s78, %s79
    %p91 = scmp.eq.s32.totalorder %s15, 1
    %p92 = por %p90, %p91
    %p94 = scmp.ne.s32.totalorder %s79, %s93
    %p95 = scmp.eq.s32.totalorder %s15, 0
    %p96 = por %p94, %p95
    %s97 = ssub.s32 %s16, %s28
    %s98 = ssub.s32 %s17, %s24
    %s99 = sor.u32 %s97, %s98
    %p100 = scmp.eq.s32.totalorder %s99, 0
    %s102 = sadd.s32 %s101, 1
    %s103 = scalar_select %p100, %s101, %s102
    %p106 = pneg %p100
    %p107 = scmp.eq.s32.totalorder %s9, 1
    %p108 = por %p106, %p107
    %p109 = scmp.ne.s32.totalorder %s101, %s104
    %p110 = scmp.eq.s32.totalorder %s9, 0
    %p111 = por %p109, %p110
    %p112 = scmp.ne.s32.totalorder %s101, %s104
    %p113 = scmp.eq.s32.totalorder %s14, 1
    %p114 = por %p112, %p113
    %p115 = scmp.ne.s32.totalorder %s104, %s105
    %p116 = scmp.eq.s32.totalorder %s14, 0
    %p117 = por %p115, %p116
    %p118 = scmp.ne.s32.totalorder %s104, %s105
    %p119 = scmp.eq.s32.totalorder %s15, 1
    %p120 = por %p118, %p119
    %p122 = scmp.ne.s32.totalorder %s105, %s121
    %p123 = scmp.eq.s32.totalorder %s15, 0
    %p124 = por %p122, %p123
    %p125 = scmp.le.s32.totalorder 1, %s9
    %p126 = scmp.lt.s32.totalorder %s9, 3
    %p127 = pnand %p125, %p126
    %p128 = pneg %p127
    // Predicated region
    $region9: #{tpu_custom_call.1} parent=5 // pred_check
      _
    $region10: #{tpu_custom_call.1} parent=5 // pred_check_branch
      %130 = sbr.rel (%p127) target = $region12
    $region11: #{tpu_custom_call.1} parent=5 // pred_region
      %s131 = ssub.s32 %s9, 1
      // Predicated region
      $region13: #{tpu_custom_call.1} parent=11 // pred_check
        %p132 = pneg %p68
      $region14: #{tpu_custom_call.1} parent=11 // pred_check_branch
        %134 = sbr.rel (%p132) target = $region16
      $region15: #{tpu_custom_call.1} parent=11 // pred_region
        _
      $region16: #{tpu_custom_call.1} parent=11 // pred_fallthru
        _
      // Predicated region
      $region17: #{tpu_custom_call.1} parent=11 // pred_check
        %p135 = pneg %p89
      $region18: #{tpu_custom_call.1} parent=11 // pred_check_branch
        %137 = sbr.rel (%p135) target = $region20
      $region19: #{tpu_custom_call.1} parent=11 // pred_region
        _
      $region20: #{tpu_custom_call.1} parent=11 // pred_fallthru
        _
    $region12: #{tpu_custom_call.1} parent=5 // pred_fallthru
      _
    %p138 = scmp.lt.s32.totalorder %s9, 2
    // Predicated region
    $region21: #{tpu_custom_call.1} parent=5 // pred_check
      %p139 = pneg %p138
    $region22: #{tpu_custom_call.1} parent=5 // pred_check_branch
      %141 = sbr.rel (%p139) target = $region24
    $region23: #{tpu_custom_call.1} parent=5 // pred_region
      // Predicated region
      $region25: #{tpu_custom_call.1} parent=23 // pred_check
        %p142 = pneg %p41
      $region26: #{tpu_custom_call.1} parent=23 // pred_check_branch
        %144 = sbr.rel (%p142) target = $region28
      $region27: #{tpu_custom_call.1} parent=23 // pred_region
        %p145 = scmp.lt.s32.totalorder %s16, 1
        %s146 = scalar_select %p145, %s16, 1
        %s147 = smul.addr %s146, 2
        %s148 = smul.addr %s147, 4
        %s149 = scalar_lea.vmem %s0, %s148
      $region28: #{tpu_custom_call.1} parent=23 // pred_fallthru
        _
    $region24: #{tpu_custom_call.1} parent=5 // pred_fallthru
      _
    %p150 = scmp.le.s32.totalorder 1, %s9
    %p151 = scmp.lt.s32.totalorder %s9, 3
    %p152 = pnand %p150, %p151
    %p153 = pneg %p152
    // Predicated region
    $region29: #{tpu_custom_call.1} parent=5 // pred_check
      _
    $region30: #{tpu_custom_call.1} parent=5 // pred_check_branch
      %155 = sbr.rel (%p152) target = $region32
    $region31: #{tpu_custom_call.1} parent=5 // pred_region
      %s156 = ssub.s32 %s9, 1
      %p157 = scmp.lt.s32.totalorder %s18, 1
      %s158 = scalar_select %p157, %s18, 1
      %s159 = smul.addr %s158, 2
      %s160 = smul.addr %s159, 4
      %s161 = scalar_lea.vmem %s0, %s160
      %p162 = pneg %p47
      %p163 = pneg %p44
      %p164 = pneg %p68
      %p165 = pneg %p65
      %p166 = pneg %p89
      %p167 = pneg %p86
      %p168 = pneg %p117
      %p169 = pneg %p114
      %p170 = scmp.lt.s32.totalorder %s18, 1
      %s171 = scalar_select %p170, %s18, 1
      %p172 = scmp.lt.s32.totalorder %s19, 0
      %s173 = scalar_select %p172, %s19, 0
      %s174 = sadd.s32 %s173, %s171
      %s175 = smul.addr %s174, 8
      %s176 = scalar_lea.vmem %s3, %s175
      %p177 = scmp.lt.s32.totalorder %s18, 1
      %s178 = scalar_select %p177, %s18, 1
      %s179 = smul.addr %s178, 2
      %s180 = smul.addr %s179, 4
      %s181 = scalar_lea.vmem %s0, %s180
      %p182 = scmp.lt.s32.totalorder %s18, 1
      %s183 = scalar_select %p182, %s18, 1
      %p184 = scmp.lt.s32.totalorder %s19, 0
      %s185 = scalar_select %p184, %s19, 0
      %s186 = sadd.s32 %s185, %s183
      %s187 = smul.addr %s186, 8
      %s188 = scalar_lea.vmem %s3, %s187
      %v189 = vld [vmem:[%s181] sm:$0xf]
      %v190 = vld [vmem:[%s1] sm:$0xff]
      %s191 = scalar_lea.vmem %s1, 8
      %v192 = vld [vmem:[%s191] sm:$0xff]
      %194 = vrot.lane.b32.xlu0 %v189, 127
      %v195 = vpop.permute.xlu0 %194
      %vm196 = vcmask 31744
      %v198 = vsel %vm196, %v192, 0
      %vm200 = vcmask 1043456
      %v201 = vsel %vm200, %v195, 0
      %203 = vmatprep.subr.mxu0 0.0
      %204 = vmatpush1.msra.mxu0 %v201
      %205 = vmatprep.subr.mxu0 0.0
      %206 = vmatpush1.msra.mxu0 0.0
      %207 = vmatprep.subr.mxu0 0.0
      %208 = vmatpush1.msra.mxu0 0.0
      %209 = vmatprep.subr.mxu0 0.0
      %210 = vmatpush1.msra.mxu0 0.0
      %211 = vmatprep.subr.mxu0 0.0
      %212 = vmatpush1.msra.mxu0 0.0
      %213 = vmatprep.subr.mxu0 0.0
      %214 = vmatpush1.msra.mxu0 0.0
      %215 = vmatprep.subr.mxu0 0.0
      %216 = vmatpush1.msra.mxu0 0.0
      %217 = vmatprep.subr.mxu0 0.0
      %218 = vmatpush1.msra.mxu0 0.0
      %219 = vmatprep.subr.mxu0 0.0
      %220 = vmatpush1.msra.mxu0 0.0
      %221 = vmatprep.subr.mxu0 0.0
      %222 = vmatpush1.msra.mxu0 0.0
      %223 = vmatprep.subr.mxu0 0.0
      %224 = vmatpush1.msra.mxu0 0.0
      %225 = vmatprep.subr.mxu0 0.0
      %226 = vmatpush1.msra.mxu0 0.0
      %227 = vmatprep.subr.mxu0 0.0
      %228 = vmatpush1.msra.mxu0 0.0
      %229 = vmatprep.subr.mxu0 0.0
      %230 = vmatpush1.msra.mxu0 0.0
      %231 = vmatprep.subr.mxu0 0.0
      %232 = vmatpush1.msra.mxu0 0.0
      %233 = vmatprep.subr.mxu0 0.0
      %234 = vmatpush1.msra.mxu0 0.0
      %235 = vmatprep.subr.mxu0 0.0
      %236 = vmatpush1.msra.mxu0 0.0
      %237 = vmatprep.subr.mxu0 0.0
      %238 = vmatpush1.msra.mxu0 0.0
      %239 = vmatprep.subr.mxu0 0.0
      %240 = vmatpush1.msra.mxu0 0.0
      %241 = vmatprep.subr.mxu0 0.0
      %242 = vmatpush1.msra.mxu0 0.0
      %243 = vmatprep.subr.mxu0 0.0
      %244 = vmatpush1.msra.mxu0 0.0
      %245 = vmatprep.subr.mxu0 0.0
      %246 = vmatpush1.msra.mxu0 0.0
      %247 = vmatprep.subr.mxu0 0.0
      %248 = vmatpush1.msra.mxu0 0.0
      %249 = vmatprep.subr.mxu0 0.0
      %250 = vmatpush1.msra.mxu0 0.0
      %251 = vmatprep.subr.mxu0 0.0
      %252 = vmatpush1.msra.mxu0 0.0
      %253 = vmatprep.subr.mxu0 0.0
      %254 = vmatpush1.msra.mxu0 0.0
      %255 = vmatprep.subr.mxu0 0.0
      %256 = vmatpush1.msra.mxu0 0.0
      %257 = vmatprep.subr.mxu0 0.0
      %258 = vmatpush1.msra.mxu0 0.0
      %259 = vmatprep.subr.mxu0 0.0
      %260 = vmatpush1.msra.mxu0 0.0
      %261 = vmatprep.subr.mxu0 0.0
      %262 = vmatpush1.msra.mxu0 0.0
      %263 = vmatprep.subr.mxu0 0.0
      %264 = vmatpush1.msra.mxu0 0.0
      %265 = vmatprep.subr.mxu0 0.0
      %266 = vmatpush1.msra.mxu0 0.0
      %267 = vmatprep.mubr.f32.mxu0 0.0
      %268 = vmatmul.mubr.f32.gmra.mrb[0].mxu0 %v198
      %v269 = vpop.f32.mrb[0].mxu0
      %v270 = vadd.f32 0.0, %v269
      %v271 = vpop.f32.mrb[0].mxu0
      %272 = vdwg.mxu0
      %v274 = vsel %vm196, %v190, 0
      %v276 = vsel %vm200, %v189, 0
      %278 = vmatprep.subr.mxu0 0.0
      %279 = vmatpush1.msra.mxu0 %v276
      %280 = vmatprep.subr.mxu0 0.0
      %281 = vmatpush1.msra.mxu0 0.0
      %282 = vmatprep.subr.mxu0 0.0
      %283 = vmatpush1.msra.mxu0 0.0
      %284 = vmatprep.subr.mxu0 0.0
      %285 = vmatpush1.msra.mxu0 0.0
      %286 = vmatprep.subr.mxu0 0.0
      %287 = vmatpush1.msra.mxu0 0.0
      %288 = vmatprep.subr.mxu0 0.0
      %289 = vmatpush1.msra.mxu0 0.0
      %290 = vmatprep.subr.mxu0 0.0
      %291 = vmatpush1.msra.mxu0 0.0
      %292 = vmatprep.subr.mxu0 0.0
      %293 = vmatpush1.msra.mxu0 0.0
      %294 = vmatprep.subr.mxu0 0.0
      %295 = vmatpush1.msra.mxu0 0.0
      %296 = vmatprep.subr.mxu0 0.0
      %297 = vmatpush1.msra.mxu0 0.0
      %298 = vmatprep.subr.mxu0 0.0
      %299 = vmatpush1.msra.mxu0 0.0
      %300 = vmatprep.subr.mxu0 0.0
      %301 = vmatpush1.msra.mxu0 0.0
      %302 = vmatprep.subr.mxu0 0.0
      %303 = vmatpush1.msra.mxu0 0.0
      %304 = vmatprep.subr.mxu0 0.0
      %305 = vmatpush1.msra.mxu0 0.0
      %306 = vmatprep.subr.mxu0 0.0
      %307 = vmatpush1.msra.mxu0 0.0
      %308 = vmatprep.subr.mxu0 0.0
      %309 = vmatpush1.msra.mxu0 0.0
      %310 = vmatprep.subr.mxu0 0.0
      %311 = vmatpush1.msra.mxu0 0.0
      %312 = vmatprep.subr.mxu0 0.0
      %313 = vmatpush1.msra.mxu0 0.0
      %314 = vmatprep.subr.mxu0 0.0
      %315 = vmatpush1.msra.mxu0 0.0
      %316 = vmatprep.subr.mxu0 0.0
      %317 = vmatpush1.msra.mxu0 0.0
      %318 = vmatprep.subr.mxu0 0.0
      %319 = vmatpush1.msra.mxu0 0.0
      %320 = vmatprep.subr.mxu0 0.0
      %321 = vmatpush1.msra.mxu0 0.0
      %322 = vmatprep.subr.mxu0 0.0
      %323 = vmatpush1.msra.mxu0 0.0
      %324 = vmatprep.subr.mxu0 0.0
      %325 = vmatpush1.msra.mxu0 0.0
      %326 = vmatprep.subr.mxu0 0.0
      %327 = vmatpush1.msra.mxu0 0.0
      %328 = vmatprep.subr.mxu0 0.0
      %329 = vmatpush1.msra.mxu0 0.0
      %330 = vmatprep.subr.mxu0 0.0
      %331 = vmatpush1.msra.mxu0 0.0
      %332 = vmatprep.subr.mxu0 0.0
      %333 = vmatpush1.msra.mxu0 0.0
      %334 = vmatprep.subr.mxu0 0.0
      %335 = vmatpush1.msra.mxu0 0.0
      %336 = vmatprep.subr.mxu0 0.0
      %337 = vmatpush1.msra.mxu0 0.0
      %338 = vmatprep.subr.mxu0 0.0
      %339 = vmatpush1.msra.mxu0 0.0
      %340 = vmatprep.subr.mxu0 0.0
      %341 = vmatpush1.msra.mxu0 0.0
      %342 = vmatprep.mubr.f32.mxu0 0.0
      %343 = vmatmul.mubr.f32.gmra.mrb[0].mxu0 %v274
      %v344 = vpop.f32.mrb[0].mxu0
      %v345 = vadd.f32 %v270, %v344
      %v346 = vpop.f32.mrb[0].mxu0
      %347 = vdwg.mxu0
      %s348 = scalar_lea.vmem %s1, 16
      %v349 = vld [vmem:[%s348] sm:$0xff]
      %350 = vrot.lane.b32.xlu0 %v189, 126
      %v351 = vpop.permute.xlu0 %350
      %v353 = vsel %vm196, %v349, 0
      %v355 = vsel %vm200, %v351, 0
      %357 = vmatprep.subr.mxu0 0.0
      %358 = vmatpush1.msra.mxu0 %v355
      %359 = vmatprep.subr.mxu0 0.0
      %360 = vmatpush1.msra.mxu0 0.0
      %361 = vmatprep.subr.mxu0 0.0
      %362 = vmatpush1.msra.mxu0 0.0
      %363 = vmatprep.subr.mxu0 0.0
      %364 = vmatpush1.msra.mxu0 0.0
      %365 = vmatprep.subr.mxu0 0.0
      %366 = vmatpush1.msra.mxu0 0.0
      %367 = vmatprep.subr.mxu0 0.0
      %368 = vmatpush1.msra.mxu0 0.0
      %369 = vmatprep.subr.mxu0 0.0
      %370 = vmatpush1.msra.mxu0 0.0
      %371 = vmatprep.subr.mxu0 0.0
      %372 = vmatpush1.msra.mxu0 0.0
      %373 = vmatprep.subr.mxu0 0.0
      %374 = vmatpush1.msra.mxu0 0.0
      %375 = vmatprep.subr.mxu0 0.0
      %376 = vmatpush1.msra.mxu0 0.0
      %377 = vmatprep.subr.mxu0 0.0
      %378 = vmatpush1.msra.mxu0 0.0
      %379 = vmatprep.subr.mxu0 0.0
      %380 = vmatpush1.msra.mxu0 0.0
      %381 = vmatprep.subr.mxu0 0.0
      %382 = vmatpush1.msra.mxu0 0.0
      %383 = vmatprep.subr.mxu0 0.0
      %384 = vmatpush1.msra.mxu0 0.0
      %385 = vmatprep.subr.mxu0 0.0
      %386 = vmatpush1.msra.mxu0 0.0
      %387 = vmatprep.subr.mxu0 0.0
      %388 = vmatpush1.msra.mxu0 0.0
      %389 = vmatprep.subr.mxu0 0.0
      %390 = vmatpush1.msra.mxu0 0.0
      %391 = vmatprep.subr.mxu0 0.0
      %392 = vmatpush1.msra.mxu0 0.0
      %393 = vmatprep.subr.mxu0 0.0
      %394 = vmatpush1.msra.mxu0 0.0
      %395 = vmatprep.subr.mxu0 0.0
      %396 = vmatpush1.msra.mxu0 0.0
      %397 = vmatprep.subr.mxu0 0.0
      %398 = vmatpush1.msra.mxu0 0.0
      %399 = vmatprep.subr.mxu0 0.0
      %400 = vmatpush1.msra.mxu0 0.0
      %401 = vmatprep.subr.mxu0 0.0
      %402 = vmatpush1.msra.mxu0 0.0
      %403 = vmatprep.subr.mxu0 0.0
      %404 = vmatpush1.msra.mxu0 0.0
      %405 = vmatprep.subr.mxu0 0.0
      %406 = vmatpush1.msra.mxu0 0.0
      %407 = vmatprep.subr.mxu0 0.0
      %408 = vmatpush1.msra.mxu0 0.0
      %409 = vmatprep.subr.mxu0 0.0
      %410 = vmatpush1.msra.mxu0 0.0
      %411 = vmatprep.subr.mxu0 0.0
      %412 = vmatpush1.msra.mxu0 0.0
      %413 = vmatprep.subr.mxu0 0.0
      %414 = vmatpush1.msra.mxu0 0.0
      %415 = vmatprep.subr.mxu0 0.0
      %416 = vmatpush1.msra.mxu0 0.0
      %417 = vmatprep.subr.mxu0 0.0
      %418 = vmatpush1.msra.mxu0 0.0
      %419 = vmatprep.subr.mxu0 0.0
      %420 = vmatpush1.msra.mxu0 0.0
      %421 = vmatprep.mubr.f32.mxu0 0.0
      %422 = vmatmul.mubr.f32.gmra.mrb[0].mxu0 %v353
      %v423 = vpop.f32.mrb[0].mxu0
      %v424 = vadd.f32 0.0, %v423
      %v425 = vpop.f32.mrb[0].mxu0
      %426 = vdwg.mxu0
      %v427 = vadd.f32 %v345, %v424
      %v428 = vld [vmem:[%s2] sm:$0xff]
      %430 = vset.pattern.permute.xlu0 0
      %431 = vperm.xlu0 %430, %v428
      %v432 = vpop.permute.xlu0 %431
      %v434 = vadd.f32 %v427, %v432
      %vm435 = vcmask 56320
      %436 = vst.msk [vmem:[%s188] sm:$0xff] %vm435, %v434
      %p437 = scmp.lt.s32.totalorder %s18, 1
      %s438 = scalar_select %p437, %s18, 1
      %p439 = scmp.lt.s32.totalorder %s19, 0
      %s440 = scalar_select %p439, %s19, 0
      %s441 = sadd.s32 %s440, %s438
      %s442 = smul.addr %s441, 8
      %s443 = scalar_lea.vmem %s3, %s442
      // Predicated region
      $region33: #{tpu_custom_call.1} parent=31 // pred_check
        %p444 = pneg %p114
      $region34: #{tpu_custom_call.1} parent=31 // pred_check_branch
        %446 = sbr.rel (%p444) target = $region36
      $region35: #{tpu_custom_call.1} parent=31 // pred_region
        _
      $region36: #{tpu_custom_call.1} parent=31 // pred_fallthru
        _
    $region32: #{tpu_custom_call.1} parent=5 // pred_fallthru
      _
    %p447 = scmp.le.s32.totalorder 2, %s9
    // Predicated region
    $region37: #{tpu_custom_call.1} parent=5 // pred_check
      %p448 = pneg %p447
    $region38: #{tpu_custom_call.1} parent=5 // pred_check_branch
      %450 = sbr.rel (%p448) target = $region40
    $region39: #{tpu_custom_call.1} parent=5 // pred_region
      %s451 = ssub.s32 %s9, 2
      // Predicated region
      $region41: #{tpu_custom_call.1} parent=39 // pred_check
        %p452 = pneg %p120
      $region42: #{tpu_custom_call.1} parent=39 // pred_check_branch
        %454 = sbr.rel (%p452) target = $region44
      $region43: #{tpu_custom_call.1} parent=39 // pred_region
        %p455 = scmp.lt.s32.totalorder %s20, 1
        %s456 = scalar_select %p455, %s20, 1
        %p457 = scmp.lt.s32.totalorder %s21, 0
        %s458 = scalar_select %p457, %s21, 0
        %s459 = sadd.s32 %s458, %s456
        %s460 = smul.addr %s459, 8
        %s461 = scalar_lea.vmem %s3, %s460
      $region44: #{tpu_custom_call.1} parent=39 // pred_fallthru
        _
    $region40: #{tpu_custom_call.1} parent=5 // pred_fallthru
      _
  $region6: #{tpu_custom_call.1} parent=0 // loop_footer
    %s13 = sadd.s32 1, %s9
  $region7: #{tpu_custom_call.1} parent=0 // loop_footer_branch
    %8 = sbr.rel target = $region3
  $region8: #{tpu_custom_call.1} parent=0 // loop_exit
    _

</llo_original>
